<compile_context>
chip_gen: v6e
topology: v6e:2x2x1
jax: 0.10.0
libtpu: 0.0.40
codegen_flags: <defaults>
</compile_context>

<pallas_src>
import functools

import jax
import jax.numpy as jnp
from jax.experimental import pallas as pl
from jax.experimental.pallas import tpu as pltpu

# original feature dims:  286 -> 200 -> 120 -> 60 -> 1
# padded (lane-aligned):  384 -> 256 -> 128 -> 128 -> 1
D_IN, D_H1, D_H2, D_H3 = 286, 200, 120, 60
P_IN, P_H1, P_H2, P_H3 = 384, 256, 128, 128


def _round_up(n, m):
    return ((n + m - 1) // m) * m


def mlp_kernel(x_ref, w1_ref, b1_ref, w2_ref, b2_ref, w3_ref, b3_ref,
               w4_ref, b4_ref, o_ref):
    """One batch tile: 3 bf16 MXU matmuls (f32 accumulate) + f32 bias/ReLU,
    then the N=1 'predict' layer as a VPU broadcast-multiply + lane-sum."""
    x = x_ref[...]                                                    # (TB, 384) bf16
    h = jnp.dot(x, w1_ref[...], preferred_element_type=jnp.float32)
    h = jnp.maximum(h + b1_ref[...], 0.0)                             # f32 activations
    h = jnp.dot(h.astype(jnp.bfloat16), w2_ref[...],
                preferred_element_type=jnp.float32)
    h = jnp.maximum(h + b2_ref[...], 0.0)
    h = jnp.dot(h.astype(jnp.bfloat16), w3_ref[...],
                preferred_element_type=jnp.float32)
    h = jnp.maximum(h + b3_ref[...], 0.0)                             # (TB, 128) f32
    # predict: Linear(60, 1).  An N=1 matmul wastes 127/128 MXU lanes, so do it
    # on the VPU/XLU (those slots are idle while the MXU runs layers 1-3).
    out = jnp.sum(h * w4_ref[...], axis=-1, keepdims=True) + b4_ref[...]
    o_ref[...] = out.astype(o_ref.dtype)


def prepare_params(params):
    """One-time host-side prep: zero-pad to lane-aligned shapes, cast matmul
    operands to bf16.  Zero rows/cols contribute 0 to every dot, so results
    are unchanged."""
    (w1, b1), (w2, b2), (w3, b3), (w4, b4) = params

    def pad2(a, r, c):
        return jnp.pad(a, ((0, r - a.shape[0]), (0, c - a.shape[1])))

    w1p = pad2(w1, P_IN, P_H1).astype(jnp.bfloat16)
    w2p = pad2(w2, P_H1, P_H2).astype(jnp.bfloat16)
    w3p = pad2(w3, P_H2, P_H3).astype(jnp.bfloat16)
    w4p = pad2(w4.reshape(1, D_H3), 1, P_H3).astype(jnp.float32)      # (1, 128) row
    b1p = pad2(b1.reshape(1, -1), 1, P_H1).astype(jnp.float32)
    b2p = pad2(b2.reshape(1, -1), 1, P_H2).astype(jnp.float32)
    b3p = pad2(b3.reshape(1, -1), 1, P_H3).astype(jnp.float32)
    b4p = b4.reshape(1, 1).astype(jnp.float32)
    return (w1p, b1p, w2p, b2p, w3p, b3p, w4p, b4p)


@functools.partial(jax.jit, static_argnames=("tile_b",))
def net_linear_sum_forward(x, prepped_params, tile_b=1024):
    """x: any shape flattening to (-1, 286), like PyTorch's x.view(-1, 286)."""
    w1, b1, w2, b2, w3, b3, w4, b4 = prepped_params

    x2d = x.reshape(-1, D_IN)
    B = x2d.shape[0]

    # Batch tile: multiple of 8 (sublane), clamped so tiny batches stay tiny.
    tb = min(tile_b, max(8, _round_up(B, 8)))
    B_pad = _round_up(B, tb)

    # Pad batch + features (zeros) and cast the activation stream to bf16.
    xp = jnp.pad(x2d.astype(jnp.bfloat16), ((0, B_pad - B), (0, P_IN - D_IN)))

    const = lambda shape: pl.BlockSpec(shape, lambda i: (0, 0))       # VMEM-resident

    out = pl.pallas_call(
        mlp_kernel,
        out_shape=jax.ShapeDtypeStruct((B_pad, 1), jnp.float32),
        grid=(B_pad // tb,),
        in_specs=[
            pl.BlockSpec((tb, P_IN), lambda i: (i, 0)),               # x: batch-tiled
            const((P_IN, P_H1)), const((1, P_H1)),
            const((P_H1, P_H2)), const((1, P_H2)),
            const((P_H2, P_H3)), const((1, P_H3)),
            const((1, P_H3)),    const((1, 1)),
        ],
        out_specs=pl.BlockSpec((tb, 1), lambda i: (i, 0)),
        compiler_params=pltpu.CompilerParams(
            dimension_semantics=("parallel",)),                       # megacore on v7x
    )(xp, w1, b1, w2, b2, w3, b3, w4, b4)
    return out[:B]


def init_params(key):
    """Deterministic init matching nn.Linear shapes; weights stored (in, out)."""
    dims = [(286, 200), (200, 120), (120, 60), (60, 1)]
    params = []
    for i, (fan_in, fan_out) in enumerate(dims):
        kw, kb = jax.random.split(jax.random.fold_in(key, i))
        bound = 1.0 / jnp.sqrt(fan_in)
        w = jax.random.uniform(kw, (fan_in, fan_out), jnp.float32, -bound, bound)
        b = jax.random.uniform(kb, (1, fan_out), jnp.float32, -bound, bound)
        params.append((w, b))
    return params


def reference_forward(x, params):
    """Plain-JAX reference with the same numerics (bf16 operands, f32 accumulate)."""
    (w1, b1), (w2, b2), (w3, b3), (w4, b4) = params
    h = x.reshape(-1, D_IN).astype(jnp.bfloat16)
    h = jnp.maximum(jnp.dot(h, w1.astype(jnp.bfloat16),
                            preferred_element_type=jnp.float32) + b1, 0.0)
    h = jnp.maximum(jnp.dot(h.astype(jnp.bfloat16), w2.astype(jnp.bfloat16),
                            preferred_element_type=jnp.float32) + b2, 0.0)
    h = jnp.maximum(jnp.dot(h.astype(jnp.bfloat16), w3.astype(jnp.bfloat16),
                            preferred_element_type=jnp.float32) + b3, 0.0)
    return jnp.sum(h * w4.reshape(1, -1), axis=-1, keepdims=True) + b4.reshape(1, 1)


if __name__ == "__main__":
    key = jax.random.PRNGKey(0)
    params = init_params(key)
    prepped = prepare_params(params)     # one-time host-side padding / bf16 cast

    # small batch input; flattens to (8, 286) as in forward's x.view(-1, 286)
    x = jax.random.normal(jax.random.fold_in(key, 100), (8, 286), jnp.float32)

    y = net_linear_sum_forward(x, prepped)
    y = jax.block_until_ready(y)

    y_ref = reference_forward(x, params)
    assert y.shape == (8, 1)
    assert jnp.allclose(y, y_ref, atol=2e-3, rtol=2e-3), (
        jnp.max(jnp.abs(y - y_ref)))

    print("KERNEL_OK")
</pallas_src>

<mosaic_0001>
module attributes {stable_mosaic.version = 11 : i64} {
  func.func @mlp_kernel(%arg0: i32, %arg1: memref<8x384xbf16, #tpu.memory_space<vmem>>, %arg2: memref<384x256xbf16, #tpu.memory_space<vmem>>, %arg3: memref<1x256xf32, #tpu.memory_space<vmem>>, %arg4: memref<256x128xbf16, #tpu.memory_space<vmem>>, %arg5: memref<1x128xf32, #tpu.memory_space<vmem>>, %arg6: memref<128x128xbf16, #tpu.memory_space<vmem>>, %arg7: memref<1x128xf32, #tpu.memory_space<vmem>>, %arg8: memref<1x128xf32, #tpu.memory_space<vmem>>, %arg9: memref<1x1xf32, #tpu.memory_space<vmem>>, %arg10: memref<8x1xf32, #tpu.memory_space<vmem>>) attributes {dimension_semantics = [#tpu.dimension_semantics<parallel>], iteration_bounds = array<i64: 1>, scalar_prefetch = 0 : i64, scratch_operands = 0 : i64, tpu.core_type = #tpu.core_type<tc>, window_params = [{transform_indices = @transform_0, window_bounds = array<i64: 8, 384>}, {pipeline_mode = #tpu.pipeline_mode<synchronous>, transform_indices = @transform_1, window_bounds = array<i64: 384, 256>}, {pipeline_mode = #tpu.pipeline_mode<synchronous>, transform_indices = @transform_2, window_bounds = array<i64: 1, 256>}, {pipeline_mode = #tpu.pipeline_mode<synchronous>, transform_indices = @transform_3, window_bounds = array<i64: 256, 128>}, {pipeline_mode = #tpu.pipeline_mode<synchronous>, transform_indices = @transform_4, window_bounds = array<i64: 1, 128>}, {pipeline_mode = #tpu.pipeline_mode<synchronous>, transform_indices = @transform_5, window_bounds = array<i64: 128, 128>}, {pipeline_mode = #tpu.pipeline_mode<synchronous>, transform_indices = @transform_6, window_bounds = array<i64: 1, 128>}, {pipeline_mode = #tpu.pipeline_mode<synchronous>, transform_indices = @transform_7, window_bounds = array<i64: 1, 128>}, {pipeline_mode = #tpu.pipeline_mode<synchronous>, transform_indices = @transform_8, window_bounds = array<i64: 1, 1>}, {transform_indices = @transform_9, window_bounds = array<i64: 8, 1>}]} {
    %c0 = arith.constant 0 : index
    %c0_0 = arith.constant 0 : index
    %0 = vector.load %arg1[%c0, %c0_0] : memref<8x384xbf16, #tpu.memory_space<vmem>>, vector<8x384xbf16>
    %c0_1 = arith.constant 0 : index
    %c0_2 = arith.constant 0 : index
    %1 = vector.load %arg2[%c0_1, %c0_2] : memref<384x256xbf16, #tpu.memory_space<vmem>>, vector<384x256xbf16>
    %cst = arith.constant dense<0.000000e+00> : vector<8x256xf32>
    %2 = tpu.matmul %0, %1, %cst {dimension_numbers = #tpu.dot_dimension_numbers<[1], [0], [0], [1], [0, 0, 1, 1], [], []>} : vector<8x384xbf16>, vector<384x256xbf16>, vector<8x256xf32> -> vector<8x256xf32>
    %c0_3 = arith.constant 0 : index
    %c0_4 = arith.constant 0 : index
    %3 = vector.load %arg3[%c0_3, %c0_4] : memref<1x256xf32, #tpu.memory_space<vmem>>, vector<1x256xf32>
    %4 = vector.broadcast %3 : vector<1x256xf32> to vector<8x256xf32>
    %5 = arith.addf %2, %4 : vector<8x256xf32>
    %cst_5 = arith.constant 0.000000e+00 : f32
    %6 = vector.broadcast %cst_5 : f32 to vector<8x256xf32>
    %7 = arith.maximumf %5, %6 : vector<8x256xf32>
    %8 = arith.truncf %7 : vector<8x256xf32> to vector<8x256xbf16>
    %c0_6 = arith.constant 0 : index
    %c0_7 = arith.constant 0 : index
    %9 = vector.load %arg4[%c0_6, %c0_7] : memref<256x128xbf16, #tpu.memory_space<vmem>>, vector<256x128xbf16>
    %cst_8 = arith.constant dense<0.000000e+00> : vector<8x128xf32>
    %10 = tpu.matmul %8, %9, %cst_8 {dimension_numbers = #tpu.dot_dimension_numbers<[1], [0], [0], [1], [0, 0, 1, 1], [], []>} : vector<8x256xbf16>, vector<256x128xbf16>, vector<8x128xf32> -> vector<8x128xf32>
    %c0_9 = arith.constant 0 : index
    %c0_10 = arith.constant 0 : index
    %11 = vector.load %arg5[%c0_9, %c0_10] : memref<1x128xf32, #tpu.memory_space<vmem>>, vector<1x128xf32>
    %12 = vector.broadcast %11 : vector<1x128xf32> to vector<8x128xf32>
    %13 = arith.addf %10, %12 : vector<8x128xf32>
    %cst_11 = arith.constant 0.000000e+00 : f32
    %14 = vector.broadcast %cst_11 : f32 to vector<8x128xf32>
    %15 = arith.maximumf %13, %14 : vector<8x128xf32>
    %16 = arith.truncf %15 : vector<8x128xf32> to vector<8x128xbf16>
    %c0_12 = arith.constant 0 : index
    %c0_13 = arith.constant 0 : index
    %17 = vector.load %arg6[%c0_12, %c0_13] : memref<128x128xbf16, #tpu.memory_space<vmem>>, vector<128x128xbf16>
    %cst_14 = arith.constant dense<0.000000e+00> : vector<8x128xf32>
    %18 = tpu.matmul %16, %17, %cst_14 {dimension_numbers = #tpu.dot_dimension_numbers<[1], [0], [0], [1], [0, 0, 1, 1], [], []>} : vector<8x128xbf16>, vector<128x128xbf16>, vector<8x128xf32> -> vector<8x128xf32>
    %c0_15 = arith.constant 0 : index
    %c0_16 = arith.constant 0 : index
    %19 = vector.load %arg7[%c0_15, %c0_16] : memref<1x128xf32, #tpu.memory_space<vmem>>, vector<1x128xf32>
    %20 = vector.broadcast %19 : vector<1x128xf32> to vector<8x128xf32>
    %21 = arith.addf %18, %20 : vector<8x128xf32>
    %cst_17 = arith.constant 0.000000e+00 : f32
    %22 = vector.broadcast %cst_17 : f32 to vector<8x128xf32>
    %23 = arith.maximumf %21, %22 : vector<8x128xf32>
    %c0_18 = arith.constant 0 : index
    %c0_19 = arith.constant 0 : index
    %24 = vector.load %arg8[%c0_18, %c0_19] : memref<1x128xf32, #tpu.memory_space<vmem>>, vector<1x128xf32>
    %25 = vector.broadcast %24 : vector<1x128xf32> to vector<8x128xf32>
    %26 = arith.mulf %23, %25 : vector<8x128xf32>
    %cst_20 = arith.constant dense<0.000000e+00> : vector<8xf32>
    %27 = vector.multi_reduction <add>, %26, %cst_20 [1] : vector<8x128xf32> to vector<8xf32>
    %28 = vector.shape_cast %27 : vector<8xf32> to vector<8x1xf32>
    %c0_21 = arith.constant 0 : index
    %c0_22 = arith.constant 0 : index
    %29 = vector.load %arg9[%c0_21, %c0_22] : memref<1x1xf32, #tpu.memory_space<vmem>>, vector<1x1xf32>
    %30 = vector.broadcast %29 : vector<1x1xf32> to vector<8x1xf32>
    %31 = arith.addf %28, %30 : vector<8x1xf32>
    %c0_23 = arith.constant 0 : index
    %c0_24 = arith.constant 0 : index
    %32 = vector.load %arg10[%c0_23, %c0_24] : memref<8x1xf32, #tpu.memory_space<vmem>>, vector<8x1xf32>
    tpu.vector_store %arg10[%c0_23, %c0_24], %31 {strides = array<i32>} : memref<8x1xf32, #tpu.memory_space<vmem>>, vector<8x1xf32>,
    return
  }
  func.func @transform_0(%arg0: i32) -> (i32, i32) {
    %c0_i32 = arith.constant 0 : i32
    %c0_i32_0 = arith.constant 0 : i32
    return %arg0, %c0_i32 : i32, i32
  }
  func.func @transform_1(%arg0: i32) -> (i32, i32) {
    %c0_i32 = arith.constant 0 : i32
    %c0_i32_0 = arith.constant 0 : i32
    %c0_i32_1 = arith.constant 0 : i32
    return %c0_i32, %c0_i32_0 : i32, i32
  }
  func.func @transform_2(%arg0: i32) -> (i32, i32) {
    %c0_i32 = arith.constant 0 : i32
    %c0_i32_0 = arith.constant 0 : i32
    %c0_i32_1 = arith.constant 0 : i32
    return %c0_i32, %c0_i32_0 : i32, i32
  }
  func.func @transform_3(%arg0: i32) -> (i32, i32) {
    %c0_i32 = arith.constant 0 : i32
    %c0_i32_0 = arith.constant 0 : i32
    %c0_i32_1 = arith.constant 0 : i32
    return %c0_i32, %c0_i32_0 : i32, i32
  }
  func.func @transform_4(%arg0: i32) -> (i32, i32) {
    %c0_i32 = arith.constant 0 : i32
    %c0_i32_0 = arith.constant 0 : i32
    %c0_i32_1 = arith.constant 0 : i32
    return %c0_i32, %c0_i32_0 : i32, i32
  }
  func.func @transform_5(%arg0: i32) -> (i32, i32) {
    %c0_i32 = arith.constant 0 : i32
    %c0_i32_0 = arith.constant 0 : i32
    %c0_i32_1 = arith.constant 0 : i32
    return %c0_i32, %c0_i32_0 : i32, i32
  }
  func.func @transform_6(%arg0: i32) -> (i32, i32) {
    %c0_i32 = arith.constant 0 : i32
    %c0_i32_0 = arith.constant 0 : i32
    %c0_i32_1 = arith.constant 0 : i32
    return %c0_i32, %c0_i32_0 : i32, i32
  }
  func.func @transform_7(%arg0: i32) -> (i32, i32) {
    %c0_i32 = arith.constant 0 : i32
    %c0_i32_0 = arith.constant 0 : i32
    %c0_i32_1 = arith.constant 0 : i32
    return %c0_i32, %c0_i32_0 : i32, i32
  }
  func.func @transform_8(%arg0: i32) -> (i32, i32) {
    %c0_i32 = arith.constant 0 : i32
    %c0_i32_0 = arith.constant 0 : i32
    %c0_i32_1 = arith.constant 0 : i32
    return %c0_i32, %c0_i32_0 : i32, i32
  }
  func.func @transform_9(%arg0: i32) -> (i32, i32) {
    %c0_i32 = arith.constant 0 : i32
    %c0_i32_0 = arith.constant 0 : i32
    return %arg0, %c0_i32 : i32, i32
  }
}

</mosaic_0001>

<llo_original>
// kernel: net_linear_sum_forward.1
$region0: #{net_linear_sum_forward.1}
  #allocation0 [shape = 'u32[]', space=smem, size = 0x4, offset = 0x4, fixed_abs, tag = 'smem constant byte address 0x4 - core index']
  #allocation1 [shape = 'u32[144,128]{1,0:T(1,128)}', space=vmem, size = 0x12000, scoped, tag = 'internal scratch']
  #allocation2 [shape = 'f32[1,1]{1,0:T(1,128)S(1)}', space=vmem, size = 0x200, scoped, tag = 'scoped memory for net_linear_sum_forward.1']
  %s0 = inlined_call_operand.vmem [shape: bf16[8,384], index: 0, kind: input, shape index: {}]
  %s1 = inlined_call_operand.hbm [shape: bf16[384,256], index: 1, kind: input, shape index: {}]
  %s2 = inlined_call_operand.vmem [shape: f32[1,256], index: 2, kind: input, shape index: {}]
  %s3 = inlined_call_operand.hbm [shape: bf16[256,128], index: 3, kind: input, shape index: {}]
  %s4 = inlined_call_operand.vmem [shape: f32[1,128], index: 4, kind: input, shape index: {}]
  %s5 = inlined_call_operand.vmem [shape: bf16[128,128], index: 5, kind: input, shape index: {}]
  %s6 = inlined_call_operand.hbm [shape: f32[1,128], index: 6, kind: input, shape index: {}]
  %s7 = inlined_call_operand.hbm [shape: f32[1,128], index: 7, kind: input, shape index: {}]
  %s8 = inlined_call_operand.<no memory space> [shape: f32[1,1], index: 8, kind: input, shape index: {}]
  %s9 = inlined_call_operand.vmem [shape: f32[8,1], index: 9, kind: output, shape index: {}]
  %s10 = sld [smem:[#allocation0]]
  $region62: #{net_linear_sum_forward.1} parent=0
    _
  %s12 = ssub.s32 1, %s10
  %s13 = scalar_select 0, %s12, %s10
  %v14 = vstv %s8
  %15 = vst [vmem:[#allocation2] sm:$0x1] %v14
  $region1: #{net_linear_sum_forward.1} parent=0
    #allocation3 [shape = 'u8[196608]{0}', space=vmem, size = 0x30000, scoped, tag = 'input window, operand 1, single buffered']
    #allocation4 [shape = 's32[1]{0}', space=sflag, size = 0x4, scoped, tag = 'scoped memory for net_linear_sum_forward.1']
    #allocation5 [shape = 'u8[65536]{0}', space=vmem, size = 0x10000, scoped, tag = 'input window, operand 3, single buffered']
    #allocation6 [shape = 's32[1]{0}', space=sflag, size = 0x4, scoped, tag = 'scoped memory for net_linear_sum_forward.1']
    #allocation7 [shape = 'u8[512]{0}', space=vmem, size = 0x400, scoped, tag = 'input window, operand 6, single buffered']
    #allocation8 [shape = 'u8[512]{0}', space=vmem, size = 0x400, scoped, tag = 'input window, operand 7, single buffered']
    #allocation9 [shape = 's32[1]{0}', space=sflag, size = 0x4, scoped, tag = 'scoped memory for net_linear_sum_forward.1']
    %16 = vsyncpa [#allocation4], 0
    %17 = vsyncpa [#allocation6], 0
    %18 = vsyncpa [#allocation9], 0
    // Predicated region
    $region2: #{net_linear_sum_forward.1} parent=1 // pred_check
      _
    $region3: #{net_linear_sum_forward.1} parent=1 // pred_check_branch
      %20 = sbr.rel (0) target = $region5
    $region4: #{net_linear_sum_forward.1} parent=1 // pred_region
      _
    $region5: #{net_linear_sum_forward.1} parent=1 // pred_fallthru
      _
    // Predicated region
    $region6: #{net_linear_sum_forward.1} parent=1 // pred_check
      _
    $region7: #{net_linear_sum_forward.1} parent=1 // pred_check_branch
      %22 = sbr.rel (0) target = $region9
    $region8: #{net_linear_sum_forward.1} parent=1 // pred_region
      %s24 = ssub.s32 6144, 6144
      %25 = vsyncadd [#allocation4], %s24
      %s26 = sshll.u32 [#allocation3], 4
      %s27 = int_to_ptr.vmem [resolvable:$true] %s26
      %32 = dma.hbm_to_vmem [thread:$0]  %s1, 6144, %s27, [#allocation4], 128, 128, 8
    $region9: #{net_linear_sum_forward.1} parent=1 // pred_fallthru
      _
    // Predicated region
    $region10: #{net_linear_sum_forward.1} parent=1 // pred_check
      _
    $region11: #{net_linear_sum_forward.1} parent=1 // pred_check_branch
      %34 = sbr.rel (0) target = $region13
    $region12: #{net_linear_sum_forward.1} parent=1 // pred_region
      _
    $region13: #{net_linear_sum_forward.1} parent=1 // pred_fallthru
      _
    // Predicated region
    $region14: #{net_linear_sum_forward.1} parent=1 // pred_check
      _
    $region15: #{net_linear_sum_forward.1} parent=1 // pred_check_branch
      %36 = sbr.rel (0) target = $region17
    $region16: #{net_linear_sum_forward.1} parent=1 // pred_region
      %s38 = ssub.s32 2048, 2048
      %39 = vsyncadd [#allocation6], %s38
      %s40 = sshll.u32 [#allocation5], 4
      %s41 = int_to_ptr.vmem [resolvable:$true] %s40
      %46 = dma.hbm_to_vmem [thread:$0]  %s3, 2048, %s41, [#allocation6], 64, 64, 4
    $region17: #{net_linear_sum_forward.1} parent=1 // pred_fallthru
      _
    // Predicated region
    $region18: #{net_linear_sum_forward.1} parent=1 // pred_check
      _
    $region19: #{net_linear_sum_forward.1} parent=1 // pred_check_branch
      %48 = sbr.rel (0) target = $region21
    $region20: #{net_linear_sum_forward.1} parent=1 // pred_region
      _
    $region21: #{net_linear_sum_forward.1} parent=1 // pred_fallthru
      _
    // Predicated region
    $region22: #{net_linear_sum_forward.1} parent=1 // pred_check
      _
    $region23: #{net_linear_sum_forward.1} parent=1 // pred_check_branch
      %50 = sbr.rel (0) target = $region25
    $region24: #{net_linear_sum_forward.1} parent=1 // pred_region
      _
    $region25: #{net_linear_sum_forward.1} parent=1 // pred_fallthru
      _
    // Predicated region
    $region26: #{net_linear_sum_forward.1} parent=1 // pred_check
      _
    $region27: #{net_linear_sum_forward.1} parent=1 // pred_check_branch
      %52 = sbr.rel (0) target = $region29
    $region28: #{net_linear_sum_forward.1} parent=1 // pred_region
      %s54 = ssub.s32 16, 16
      %55 = vsyncadd [#allocation6], %s54
      %s57 = sshll.u32 [#allocation7], 4
      %s58 = int_to_ptr.vmem [resolvable:$true] %s57
      %60 = dma.hbm_to_vmem [thread:$0]  %s6, 16, %s58, [#allocation6]
    $region29: #{net_linear_sum_forward.1} parent=1 // pred_fallthru
      _
    // Predicated region
    $region30: #{net_linear_sum_forward.1} parent=1 // pred_check
      _
    $region31: #{net_linear_sum_forward.1} parent=1 // pred_check_branch
      %62 = sbr.rel (0) target = $region33
    $region32: #{net_linear_sum_forward.1} parent=1 // pred_region
      %s64 = ssub.s32 16, 16
      %65 = vsyncadd [#allocation9], %s64
      %s67 = sshll.u32 [#allocation8], 4
      %s68 = int_to_ptr.vmem [resolvable:$true] %s67
      %70 = dma.hbm_to_vmem [thread:$0]  %s7, 16, %s68, [#allocation9]
    $region33: #{net_linear_sum_forward.1} parent=1 // pred_fallthru
      _
    // Predicated region
    $region34: #{net_linear_sum_forward.1} parent=1 // pred_check
      _
    $region35: #{net_linear_sum_forward.1} parent=1 // pred_check_branch
      %72 = sbr.rel (0) target = $region37
    $region36: #{net_linear_sum_forward.1} parent=1 // pred_region
      _
    $region37: #{net_linear_sum_forward.1} parent=1 // pred_fallthru
      _
    // Predicated region
    $region38: #{net_linear_sum_forward.1} parent=1 // pred_check
      _
    $region39: #{net_linear_sum_forward.1} parent=1 // pred_check_branch
      %74 = sbr.rel (0) target = $region41
    $region40: #{net_linear_sum_forward.1} parent=1 // pred_region
      %75 = dma.done [#allocation4], 6144
    $region41: #{net_linear_sum_forward.1} parent=1 // pred_fallthru
      _
    // Predicated region
    $region42: #{net_linear_sum_forward.1} parent=1 // pred_check
      _
    $region43: #{net_linear_sum_forward.1} parent=1 // pred_check_branch
      %77 = sbr.rel (0) target = $region45
    $region44: #{net_linear_sum_forward.1} parent=1 // pred_region
      %78 = dma.done [#allocation6], 2048
    $region45: #{net_linear_sum_forward.1} parent=1 // pred_fallthru
      _
    // Predicated region
    $region46: #{net_linear_sum_forward.1} parent=1 // pred_check
      _
    $region47: #{net_linear_sum_forward.1} parent=1 // pred_check_branch
      %80 = sbr.rel (0) target = $region49
    $region48: #{net_linear_sum_forward.1} parent=1 // pred_region
      %81 = dma.done [#allocation6], 16
    $region49: #{net_linear_sum_forward.1} parent=1 // pred_fallthru
      _
    // Predicated region
    $region50: #{net_linear_sum_forward.1} parent=1 // pred_check
      _
    $region51: #{net_linear_sum_forward.1} parent=1 // pred_check_branch
      %83 = sbr.rel (0) target = $region53
    $region52: #{net_linear_sum_forward.1} parent=1 // pred_region
      %84 = dma.done [#allocation9], 16
    $region53: #{net_linear_sum_forward.1} parent=1 // pred_fallthru
      _
    %v86 = vld [vmem:[%s0] sm:$0xff]
    %v87 = vld [vmem:[%s0 + $0x8] sm:$0xf]
    %v88 = vld [vmem:[#allocation3] sm:$0xff]
    %v89 = vld [vmem:[#allocation3 + $0x8] sm:$0xff]
    %v90 = vld [vmem:[#allocation3 + $0x10] sm:$0xff]
    %v91 = vld [vmem:[#allocation3 + $0x18] sm:$0xff]
    %v92 = vld [vmem:[#allocation3 + $0x20] sm:$0xff]
    %v93 = vld [vmem:[#allocation3 + $0x28] sm:$0xff]
    %v94 = vld [vmem:[#allocation3 + $0x30] sm:$0xff]
    %v95 = vld [vmem:[#allocation3 + $0x38] sm:$0xff]
    %v96 = vld [vmem:[#allocation3 + $0x40] sm:$0xff]
    %v97 = vld [vmem:[#allocation3 + $0x48] sm:$0xff]
    %v98 = vld [vmem:[#allocation3 + $0x50] sm:$0xff]
    %v99 = vld [vmem:[#allocation3 + $0x58] sm:$0xff]
    %v100 = vld [vmem:[#allocation3 + $0x60] sm:$0xff]
    %v101 = vld [vmem:[#allocation3 + $0x68] sm:$0xff]
    %v102 = vld [vmem:[#allocation3 + $0x70] sm:$0xff]
    %v103 = vld [vmem:[#allocation3 + $0x78] sm:$0xff]
    %v104 = vld [vmem:[#allocation3 + $0x80] sm:$0xff]
    %v105 = vld [vmem:[#allocation3 + $0x88] sm:$0xff]
    %v106 = vld [vmem:[#allocation3 + $0x90] sm:$0xff]
    %v107 = vld [vmem:[#allocation3 + $0x98] sm:$0xff]
    %v108 = vld [vmem:[#allocation3 + $0xa0] sm:$0xff]
    %v109 = vld [vmem:[#allocation3 + $0xa8] sm:$0xff]
    %v110 = vld [vmem:[#allocation3 + $0xb0] sm:$0xff]
    %v111 = vld [vmem:[#allocation3 + $0xb8] sm:$0xff]
    %v112 = vld [vmem:[#allocation3 + $0xc0] sm:$0xff]
    %v113 = vld [vmem:[#allocation3 + $0xc8] sm:$0xff]
    %v114 = vld [vmem:[#allocation3 + $0xd0] sm:$0xff]
    %v115 = vld [vmem:[#allocation3 + $0xd8] sm:$0xff]
    %v116 = vld [vmem:[#allocation3 + $0xe0] sm:$0xff]
    %v117 = vld [vmem:[#allocation3 + $0xe8] sm:$0xff]
    %v118 = vld [vmem:[#allocation3 + $0xf0] sm:$0xff]
    %v119 = vld [vmem:[#allocation3 + $0xf8] sm:$0xff]
    %v120 = vld [vmem:[#allocation3 + $0x100] sm:$0xff]
    %v121 = vld [vmem:[#allocation3 + $0x108] sm:$0xff]
    %v122 = vld [vmem:[#allocation3 + $0x110] sm:$0xff]
    %v123 = vld [vmem:[#allocation3 + $0x118] sm:$0xff]
    %v124 = vld [vmem:[#allocation3 + $0x120] sm:$0xff]
    %v125 = vld [vmem:[#allocation3 + $0x128] sm:$0xff]
    %v126 = vld [vmem:[#allocation3 + $0x130] sm:$0xff]
    %v127 = vld [vmem:[#allocation3 + $0x138] sm:$0xff]
    %v128 = vld [vmem:[#allocation3 + $0x140] sm:$0xff]
    %v129 = vld [vmem:[#allocation3 + $0x148] sm:$0xff]
    %v130 = vld [vmem:[#allocation3 + $0x150] sm:$0xff]
    %v131 = vld [vmem:[#allocation3 + $0x158] sm:$0xff]
    %v132 = vld [vmem:[#allocation3 + $0x160] sm:$0xff]
    %v133 = vld [vmem:[#allocation3 + $0x168] sm:$0xff]
    %v134 = vld [vmem:[#allocation3 + $0x170] sm:$0xff]
    %v135 = vld [vmem:[#allocation3 + $0x178] sm:$0xff]
    %v136 = vld [vmem:[%s2] sm:$0x3]
    %v138 = vlaneseq
    %v139 = vshrl.u32 %v138, 7
    %v140 = vsub.s32 0, %v139
    %v141 = vrot.slane %v136, %v140
    %v142 = vlaneseq
    %v143 = vshrl.u32 %v142, 7
    %v144 = vsub.s32 1, %v143
    %v145 = vrot.slane %v136, %v144
    %v150 = vunpack.c.l.b16 %v86
    %v151 = vunpack.c.h.b16 %v86
    %v152 = vunpack.c.l.b16 %v87
    %v153 = vpack.c.b16 %v150, %v150
    %v154 = vpack.c.b16 %v151, %v151
    %v155 = vpack.c.b16 %v152, %v152
    %v207 = vunpack.c.l.b16 %v88
    %v208 = vunpack.c.h.b16 %v88
    %v209 = vunpack.c.l.b16 %v89
    %v210 = vunpack.c.h.b16 %v89
    %v211 = vunpack.c.l.b16 %v90
    %v212 = vunpack.c.h.b16 %v90
    %v213 = vunpack.c.l.b16 %v91
    %v214 = vunpack.c.h.b16 %v91
    %v215 = vunpack.c.l.b16 %v92
    %v216 = vunpack.c.h.b16 %v92
    %v217 = vunpack.c.l.b16 %v93
    %v218 = vunpack.c.h.b16 %v93
    %v219 = vunpack.c.l.b16 %v94
    %v220 = vunpack.c.h.b16 %v94
    %v221 = vunpack.c.l.b16 %v95
    %v222 = vunpack.c.h.b16 %v95
    %v223 = vunpack.c.l.b16 %v96
    %v224 = vunpack.c.h.b16 %v96
    %v225 = vunpack.c.l.b16 %v97
    %v226 = vunpack.c.h.b16 %v97
    %v227 = vunpack.c.l.b16 %v98
    %v228 = vunpack.c.h.b16 %v98
    %v229 = vunpack.c.l.b16 %v99
    %v230 = vunpack.c.h.b16 %v99
    %v231 = vunpack.c.l.b16 %v100
    %v232 = vunpack.c.h.b16 %v100
    %v233 = vunpack.c.l.b16 %v101
    %v234 = vunpack.c.h.b16 %v101
    %v235 = vunpack.c.l.b16 %v102
    %v236 = vunpack.c.h.b16 %v102
    %v237 = vunpack.c.l.b16 %v103
    %v238 = vunpack.c.h.b16 %v103
    %v239 = vunpack.c.l.b16 %v104
    %v240 = vunpack.c.h.b16 %v104
    %v241 = vunpack.c.l.b16 %v105
    %v242 = vunpack.c.h.b16 %v105
    %v243 = vunpack.c.l.b16 %v106
    %v244 = vunpack.c.h.b16 %v106
    %v245 = vunpack.c.l.b16 %v107
    %v246 = vunpack.c.h.b16 %v107
    %v247 = vunpack.c.l.b16 %v108
    %v248 = vunpack.c.h.b16 %v108
    %v249 = vunpack.c.l.b16 %v109
    %v250 = vunpack.c.h.b16 %v109
    %v251 = vunpack.c.l.b16 %v110
    %v252 = vunpack.c.h.b16 %v110
    %v253 = vunpack.c.l.b16 %v111
    %v254 = vunpack.c.h.b16 %v111
    %v255 = vunpack.c.l.b16 %v112
    %v256 = vunpack.c.h.b16 %v112
    %v257 = vunpack.c.l.b16 %v113
    %v258 = vunpack.c.h.b16 %v113
    %v259 = vunpack.c.l.b16 %v114
    %v260 = vunpack.c.h.b16 %v114
    %v261 = vunpack.c.l.b16 %v115
    %v262 = vunpack.c.h.b16 %v115
    %v263 = vunpack.c.l.b16 %v116
    %v264 = vunpack.c.h.b16 %v116
    %v265 = vunpack.c.l.b16 %v117
    %v266 = vunpack.c.h.b16 %v117
    %v267 = vunpack.c.l.b16 %v118
    %v268 = vunpack.c.h.b16 %v118
    %v269 = vunpack.c.l.b16 %v119
    %v270 = vunpack.c.h.b16 %v119
    %v271 = vunpack.c.l.b16 %v120
    %v272 = vunpack.c.h.b16 %v120
    %v273 = vunpack.c.l.b16 %v121
    %v274 = vunpack.c.h.b16 %v121
    %v275 = vunpack.c.l.b16 %v122
    %v276 = vunpack.c.h.b16 %v122
    %v277 = vunpack.c.l.b16 %v123
    %v278 = vunpack.c.h.b16 %v123
    %v279 = vunpack.c.l.b16 %v124
    %v280 = vunpack.c.h.b16 %v124
    %v281 = vunpack.c.l.b16 %v125
    %v282 = vunpack.c.h.b16 %v125
    %v283 = vunpack.c.l.b16 %v126
    %v284 = vunpack.c.h.b16 %v126
    %v285 = vunpack.c.l.b16 %v127
    %v286 = vunpack.c.h.b16 %v127
    %v287 = vunpack.c.l.b16 %v128
    %v288 = vunpack.c.h.b16 %v128
    %v289 = vunpack.c.l.b16 %v129
    %v290 = vunpack.c.h.b16 %v129
    %v291 = vunpack.c.l.b16 %v130
    %v292 = vunpack.c.h.b16 %v130
    %v293 = vunpack.c.l.b16 %v131
    %v294 = vunpack.c.h.b16 %v131
    %v295 = vunpack.c.l.b16 %v132
    %v296 = vunpack.c.h.b16 %v132
    %v297 = vunpack.c.l.b16 %v133
    %v298 = vunpack.c.h.b16 %v133
    %v299 = vunpack.c.l.b16 %v134
    %v300 = vunpack.c.h.b16 %v134
    %v301 = vunpack.c.l.b16 %v135
    %v302 = vunpack.c.h.b16 %v135
    %v303 = vpack.c.b16 %v209, %v207
    %v304 = vpack.c.b16 %v210, %v208
    %v305 = vpack.c.b16 %v213, %v211
    %v306 = vpack.c.b16 %v214, %v212
    %v307 = vpack.c.b16 %v217, %v215
    %v308 = vpack.c.b16 %v218, %v216
    %v309 = vpack.c.b16 %v221, %v219
    %v310 = vpack.c.b16 %v222, %v220
    %v311 = vpack.c.b16 %v225, %v223
    %v312 = vpack.c.b16 %v226, %v224
    %v313 = vpack.c.b16 %v229, %v227
    %v314 = vpack.c.b16 %v230, %v228
    %v315 = vpack.c.b16 %v233, %v231
    %v316 = vpack.c.b16 %v234, %v232
    %v317 = vpack.c.b16 %v237, %v235
    %v318 = vpack.c.b16 %v238, %v236
    %v319 = vpack.c.b16 %v241, %v239
    %v320 = vpack.c.b16 %v242, %v240
    %v321 = vpack.c.b16 %v245, %v243
    %v322 = vpack.c.b16 %v246, %v244
    %v323 = vpack.c.b16 %v249, %v247
    %v324 = vpack.c.b16 %v250, %v248
    %v325 = vpack.c.b16 %v253, %v251
    %v326 = vpack.c.b16 %v254, %v252
    %v327 = vpack.c.b16 %v257, %v255
    %v328 = vpack.c.b16 %v258, %v256
    %v329 = vpack.c.b16 %v261, %v259
    %v330 = vpack.c.b16 %v262, %v260
    %v331 = vpack.c.b16 %v265, %v263
    %v332 = vpack.c.b16 %v266, %v264
    %v333 = vpack.c.b16 %v269, %v267
    %v334 = vpack.c.b16 %v270, %v268
    %v335 = vpack.c.b16 %v273, %v271
    %v336 = vpack.c.b16 %v274, %v272
    %v337 = vpack.c.b16 %v277, %v275
    %v338 = vpack.c.b16 %v278, %v276
    %v339 = vpack.c.b16 %v281, %v279
    %v340 = vpack.c.b16 %v282, %v280
    %v341 = vpack.c.b16 %v285, %v283
    %v342 = vpack.c.b16 %v286, %v284
    %v343 = vpack.c.b16 %v289, %v287
    %v344 = vpack.c.b16 %v290, %v288
    %v345 = vpack.c.b16 %v293, %v291
    %v346 = vpack.c.b16 %v294, %v292
    %v347 = vpack.c.b16 %v297, %v295
    %v348 = vpack.c.b16 %v298, %v296
    %v349 = vpack.c.b16 %v301, %v299
    %v350 = vpack.c.b16 %v302, %v300
    %399 = vmatprep.subr.bf16.mxu0 %v318
    %400 = vmatpush1.bf16.msra.mxu0 %v317
    %401 = vmatprep.subr.bf16.mxu0 %v316
    %402 = vmatpush1.bf16.msra.mxu0 %v315
    %403 = vmatprep.subr.bf16.mxu0 %v314
    %404 = vmatpush1.bf16.msra.mxu0 %v313
    %405 = vmatprep.subr.bf16.mxu0 %v312
    %406 = vmatpush1.bf16.msra.mxu0 %v311
    %407 = vmatprep.subr.bf16.mxu0 %v310
    %408 = vmatpush1.bf16.msra.mxu0 %v309
    %409 = vmatprep.subr.bf16.mxu0 %v308
    %410 = vmatpush1.bf16.msra.mxu0 %v307
    %411 = vmatprep.subr.bf16.mxu0 %v306
    %412 = vmatpush1.bf16.msra.mxu0 %v305
    %413 = vmatprep.subr.bf16.mxu0 %v304
    %414 = vmatpush1.bf16.msra.mxu0 %v303
    %415 = vmatprep.subr.bf16.mxu0 %v334
    %416 = vmatpush2.bf16.msra.mxu0 %v333
    %417 = vmatprep.subr.bf16.mxu0 %v332
    %418 = vmatpush2.bf16.msra.mxu0 %v331
    %419 = vmatprep.subr.bf16.mxu0 %v330
    %420 = vmatpush2.bf16.msra.mxu0 %v329
    %421 = vmatprep.subr.bf16.mxu0 %v328
    %422 = vmatpush2.bf16.msra.mxu0 %v327
    %423 = vmatprep.subr.bf16.mxu0 %v326
    %424 = vmatpush2.bf16.msra.mxu0 %v325
    %425 = vmatprep.subr.bf16.mxu0 %v324
    %426 = vmatpush2.bf16.msra.mxu0 %v323
    %427 = vmatprep.subr.bf16.mxu0 %v322
    %428 = vmatpush2.bf16.msra.mxu0 %v321
    %429 = vmatprep.subr.bf16.mxu0 %v320
    %430 = vmatpush2.bf16.msra.mxu0 %v319
    %431 = vmatprep.mubr.bf16.mxu0 %v154
    %432 = vmatmul.mubr.bf16.gmra.mxu0 %v153
    %v433 = vpop.f32.mrf.mxu0
    %v434 = vadd.f32 %v141, %v433
    %v435 = vpop.f32.mrf.mxu0
    %v436 = vadd.f32 %v145, %v435
    %v437 = vpop.f32.mrf.mxu0
    %v438 = vpop.f32.mrf.mxu0
    %439 = vdwg.mxu0
    %440 = vmatprep.subr.bf16.mxu0 %v350
    %441 = vmatpush1.bf16.msra.mxu0 %v349
    %442 = vmatprep.subr.bf16.mxu0 %v348
    %443 = vmatpush1.bf16.msra.mxu0 %v347
    %444 = vmatprep.subr.bf16.mxu0 %v346
    %445 = vmatpush1.bf16.msra.mxu0 %v345
    %446 = vmatprep.subr.bf16.mxu0 %v344
    %447 = vmatpush1.bf16.msra.mxu0 %v343
    %448 = vmatprep.subr.bf16.mxu0 %v342
    %449 = vmatpush1.bf16.msra.mxu0 %v341
    %450 = vmatprep.subr.bf16.mxu0 %v340
    %451 = vmatpush1.bf16.msra.mxu0 %v339
    %452 = vmatprep.subr.bf16.mxu0 %v338
    %453 = vmatpush1.bf16.msra.mxu0 %v337
    %454 = vmatprep.subr.bf16.mxu0 %v336
    %455 = vmatpush1.bf16.msra.mxu0 %v335
    %456 = vmatprep.subr.bf16.mxu0 0
    %457 = vmatpush2.bf16.msra.mxu0 0
    %458 = vmatprep.subr.bf16.mxu0 0
    %459 = vmatpush2.bf16.msra.mxu0 0
    %460 = vmatprep.subr.bf16.mxu0 0
    %461 = vmatpush2.bf16.msra.mxu0 0
    %462 = vmatprep.subr.bf16.mxu0 0
    %463 = vmatpush2.bf16.msra.mxu0 0
    %464 = vmatprep.subr.bf16.mxu0 0
    %465 = vmatpush2.bf16.msra.mxu0 0
    %466 = vmatprep.subr.bf16.mxu0 0
    %467 = vmatpush2.bf16.msra.mxu0 0
    %468 = vmatprep.subr.bf16.mxu0 0
    %469 = vmatpush2.bf16.msra.mxu0 0
    %470 = vmatprep.subr.bf16.mxu0 0
    %471 = vmatpush2.bf16.msra.mxu0 0
    %472 = vmatprep.mubr.bf16.mxu0 0
    %473 = vmatmul.mubr.bf16.gmra.mxu0 %v155
    %v474 = vpop.f32.mrf.mxu0
    %v475 = vadd.f32 %v434, %v474
    %v476 = vpop.f32.mrf.mxu0
    %v477 = vadd.f32 %v436, %v476
    %v478 = vpop.f32.mrf.mxu0
    %v479 = vpop.f32.mrf.mxu0
    %480 = vdwg.mxu0
    %v481 = vmax.f32 %v475, 0.0
    %v482 = vmax.f32 %v477, 0.0
    %v483 = vpack.c.bf16 %v481, %v481
    %v484 = vpack.c.bf16 %v482, %v482
    %v485 = vld [vmem:[#allocation5] sm:$0xf]
    %v486 = vld [vmem:[#allocation5 + $0x4] sm:$0xf]
    %v487 = vld [vmem:[#allocation5 + $0x8] sm:$0xf]
    %v488 = vld [vmem:[#allocation5 + $0xc] sm:$0xf]
    %v489 = vld [vmem:[#allocation5 + $0x10] sm:$0xf]
    %v490 = vld [vmem:[#allocation5 + $0x14] sm:$0xf]
    %v491 = vld [vmem:[#allocation5 + $0x18] sm:$0xf]
    %v492 = vld [vmem:[#allocation5 + $0x1c] sm:$0xf]
    %v493 = vld [vmem:[#allocation5 + $0x20] sm:$0xf]
    %v494 = vld [vmem:[#allocation5 + $0x24] sm:$0xf]
    %v495 = vld [vmem:[#allocation5 + $0x28] sm:$0xf]
    %v496 = vld [vmem:[#allocation5 + $0x2c] sm:$0xf]
    %v497 = vld [vmem:[#allocation5 + $0x30] sm:$0xf]
    %v498 = vld [vmem:[#allocation5 + $0x34] sm:$0xf]
    %v499 = vld [vmem:[#allocation5 + $0x38] sm:$0xf]
    %v500 = vld [vmem:[#allocation5 + $0x3c] sm:$0xf]
    %v501 = vld [vmem:[#allocation5 + $0x40] sm:$0xf]
    %v502 = vld [vmem:[#allocation5 + $0x44] sm:$0xf]
    %v503 = vld [vmem:[#allocation5 + $0x48] sm:$0xf]
    %v504 = vld [vmem:[#allocation5 + $0x4c] sm:$0xf]
    %v505 = vld [vmem:[#allocation5 + $0x50] sm:$0xf]
    %v506 = vld [vmem:[#allocation5 + $0x54] sm:$0xf]
    %v507 = vld [vmem:[#allocation5 + $0x58] sm:$0xf]
    %v508 = vld [vmem:[#allocation5 + $0x5c] sm:$0xf]
    %v509 = vld [vmem:[#allocation5 + $0x60] sm:$0xf]
    %v510 = vld [vmem:[#allocation5 + $0x64] sm:$0xf]
    %v511 = vld [vmem:[#allocation5 + $0x68] sm:$0xf]
    %v512 = vld [vmem:[#allocation5 + $0x6c] sm:$0xf]
    %v513 = vld [vmem:[#allocation5 + $0x70] sm:$0xf]
    %v514 = vld [vmem:[#allocation5 + $0x74] sm:$0xf]
    %v515 = vld [vmem:[#allocation5 + $0x78] sm:$0xf]
    %v516 = vld [vmem:[#allocation5 + $0x7c] sm:$0xf]
    %v517 = vld [vmem:[%s4] sm:$0x1]
    %v519 = vlaneseq
    %v520 = vshrl.u32 %v519, 7
    %v521 = vsub.s32 0, %v520
    %v522 = vrot.slane %v517, %v521
    %v556 = vunpack.c.l.b16 %v485
    %v557 = vunpack.c.l.b16 %v486
    %v558 = vunpack.c.l.b16 %v487
    %v559 = vunpack.c.l.b16 %v488
    %v560 = vunpack.c.l.b16 %v489
    %v561 = vunpack.c.l.b16 %v490
    %v562 = vunpack.c.l.b16 %v491
    %v563 = vunpack.c.l.b16 %v492
    %v564 = vunpack.c.l.b16 %v493
    %v565 = vunpack.c.l.b16 %v494
    %v566 = vunpack.c.l.b16 %v495
    %v567 = vunpack.c.l.b16 %v496
    %v568 = vunpack.c.l.b16 %v497
    %v569 = vunpack.c.l.b16 %v498
    %v570 = vunpack.c.l.b16 %v499
    %v571 = vunpack.c.l.b16 %v500
    %v572 = vunpack.c.l.b16 %v501
    %v573 = vunpack.c.l.b16 %v502
    %v574 = vunpack.c.l.b16 %v503
    %v575 = vunpack.c.l.b16 %v504
    %v576 = vunpack.c.l.b16 %v505
    %v577 = vunpack.c.l.b16 %v506
    %v578 = vunpack.c.l.b16 %v507
    %v579 = vunpack.c.l.b16 %v508
    %v580 = vunpack.c.l.b16 %v509
    %v581 = vunpack.c.l.b16 %v510
    %v582 = vunpack.c.l.b16 %v511
    %v583 = vunpack.c.l.b16 %v512
    %v584 = vunpack.c.l.b16 %v513
    %v585 = vunpack.c.l.b16 %v514
    %v586 = vunpack.c.l.b16 %v515
    %v587 = vunpack.c.l.b16 %v516
    %v588 = vpack.c.b16 %v557, %v556
    %v589 = vpack.c.b16 %v559, %v558
    %v590 = vpack.c.b16 %v561, %v560
    %v591 = vpack.c.b16 %v563, %v562
    %v592 = vpack.c.b16 %v565, %v564
    %v593 = vpack.c.b16 %v567, %v566
    %v594 = vpack.c.b16 %v569, %v568
    %v595 = vpack.c.b16 %v571, %v570
    %v596 = vpack.c.b16 %v573, %v572
    %v597 = vpack.c.b16 %v575, %v574
    %v598 = vpack.c.b16 %v577, %v576
    %v599 = vpack.c.b16 %v579, %v578
    %v600 = vpack.c.b16 %v581, %v580
    %v601 = vpack.c.b16 %v583, %v582
    %v602 = vpack.c.b16 %v585, %v584
    %v603 = vpack.c.b16 %v587, %v586
    %620 = vmatprep.subr.bf16.mxu0 0
    %621 = vmatpush1.bf16.msra.mxu0 %v595
    %622 = vmatprep.subr.bf16.mxu0 0
    %623 = vmatpush1.bf16.msra.mxu0 %v594
    %624 = vmatprep.subr.bf16.mxu0 0
    %625 = vmatpush1.bf16.msra.mxu0 %v593
    %626 = vmatprep.subr.bf16.mxu0 0
    %627 = vmatpush1.bf16.msra.mxu0 %v592
    %628 = vmatprep.subr.bf16.mxu0 0
    %629 = vmatpush1.bf16.msra.mxu0 %v591
    %630 = vmatprep.subr.bf16.mxu0 0
    %631 = vmatpush1.bf16.msra.mxu0 %v590
    %632 = vmatprep.subr.bf16.mxu0 0
    %633 = vmatpush1.bf16.msra.mxu0 %v589
    %634 = vmatprep.subr.bf16.mxu0 0
    %635 = vmatpush1.bf16.msra.mxu0 %v588
    %636 = vmatprep.subr.bf16.mxu0 0
    %637 = vmatpush2.bf16.msra.mxu0 %v603
    %638 = vmatprep.subr.bf16.mxu0 0
    %639 = vmatpush2.bf16.msra.mxu0 %v602
    %640 = vmatprep.subr.bf16.mxu0 0
    %641 = vmatpush2.bf16.msra.mxu0 %v601
    %642 = vmatprep.subr.bf16.mxu0 0
    %643 = vmatpush2.bf16.msra.mxu0 %v600
    %644 = vmatprep.subr.bf16.mxu0 0
    %645 = vmatpush2.bf16.msra.mxu0 %v599
    %646 = vmatprep.subr.bf16.mxu0 0
    %647 = vmatpush2.bf16.msra.mxu0 %v598
    %648 = vmatprep.subr.bf16.mxu0 0
    %649 = vmatpush2.bf16.msra.mxu0 %v597
    %650 = vmatprep.subr.bf16.mxu0 0
    %651 = vmatpush2.bf16.msra.mxu0 %v596
    %652 = vmatprep.mubr.bf16.mxu0 %v484
    %653 = vmatmul.mubr.bf16.gmra.mxu0 %v483
    %v654 = vpop.f32.mrf.mxu0
    %v655 = vadd.f32 %v522, %v654
    %v656 = vpop.f32.mrf.mxu0
    %v657 = vpop.f32.mrf.mxu0
    %v658 = vpop.f32.mrf.mxu0
    %659 = vdwg.mxu0
    %v660 = vmax.f32 %v655, 0.0
    %v661 = vpack.c.bf16 %v660, %v660
    %v662 = vld [vmem:[%s5] sm:$0xf]
    %v663 = vld [vmem:[%s5 + $0x4] sm:$0xf]
    %v664 = vld [vmem:[%s5 + $0x8] sm:$0xf]
    %v665 = vld [vmem:[%s5 + $0xc] sm:$0xf]
    %v666 = vld [vmem:[%s5 + $0x10] sm:$0xf]
    %v667 = vld [vmem:[%s5 + $0x14] sm:$0xf]
    %v668 = vld [vmem:[%s5 + $0x18] sm:$0xf]
    %v669 = vld [vmem:[%s5 + $0x1c] sm:$0xf]
    %v670 = vld [vmem:[%s5 + $0x20] sm:$0xf]
    %v671 = vld [vmem:[%s5 + $0x24] sm:$0xf]
    %v672 = vld [vmem:[%s5 + $0x28] sm:$0xf]
    %v673 = vld [vmem:[%s5 + $0x2c] sm:$0xf]
    %v674 = vld [vmem:[%s5 + $0x30] sm:$0xf]
    %v675 = vld [vmem:[%s5 + $0x34] sm:$0xf]
    %v676 = vld [vmem:[%s5 + $0x38] sm:$0xf]
    %v677 = vld [vmem:[%s5 + $0x3c] sm:$0xf]
    %v678 = vld [vmem:[#allocation7] sm:$0x1]
    %v680 = vlaneseq
    %v681 = vshrl.u32 %v680, 7
    %v682 = vsub.s32 0, %v681
    %v683 = vrot.slane %v678, %v682
    %v701 = vunpack.c.l.b16 %v662
    %v702 = vunpack.c.l.b16 %v663
    %v703 = vunpack.c.l.b16 %v664
    %v704 = vunpack.c.l.b16 %v665
    %v705 = vunpack.c.l.b16 %v666
    %v706 = vunpack.c.l.b16 %v667
    %v707 = vunpack.c.l.b16 %v668
    %v708 = vunpack.c.l.b16 %v669
    %v709 = vunpack.c.l.b16 %v670
    %v710 = vunpack.c.l.b16 %v671
    %v711 = vunpack.c.l.b16 %v672
    %v712 = vunpack.c.l.b16 %v673
    %v713 = vunpack.c.l.b16 %v674
    %v714 = vunpack.c.l.b16 %v675
    %v715 = vunpack.c.l.b16 %v676
    %v716 = vunpack.c.l.b16 %v677
    %v717 = vpack.c.b16 %v702, %v701
    %v718 = vpack.c.b16 %v704, %v703
    %v719 = vpack.c.b16 %v706, %v705
    %v720 = vpack.c.b16 %v708, %v707
    %v721 = vpack.c.b16 %v710, %v709
    %v722 = vpack.c.b16 %v712, %v711
    %v723 = vpack.c.b16 %v714, %v713
    %v724 = vpack.c.b16 %v716, %v715
    %733 = vmatprep.subr.bf16.mxu0 0
    %734 = vmatpush1.bf16.msra.mxu0 %v724
    %735 = vmatprep.subr.bf16.mxu0 0
    %736 = vmatpush1.bf16.msra.mxu0 %v723
    %737 = vmatprep.subr.bf16.mxu0 0
    %738 = vmatpush1.bf16.msra.mxu0 %v722
    %739 = vmatprep.subr.bf16.mxu0 0
    %740 = vmatpush1.bf16.msra.mxu0 %v721
    %741 = vmatprep.subr.bf16.mxu0 0
    %742 = vmatpush1.bf16.msra.mxu0 %v720
    %743 = vmatprep.subr.bf16.mxu0 0
    %744 = vmatpush1.bf16.msra.mxu0 %v719
    %745 = vmatprep.subr.bf16.mxu0 0
    %746 = vmatpush1.bf16.msra.mxu0 %v718
    %747 = vmatprep.subr.bf16.mxu0 0
    %748 = vmatpush1.bf16.msra.mxu0 %v717
    %749 = vmatprep.subr.bf16.mxu0 0
    %750 = vmatpush2.bf16.msra.mxu0 0
    %751 = vmatprep.subr.bf16.mxu0 0
    %752 = vmatpush2.bf16.msra.mxu0 0
    %753 = vmatprep.subr.bf16.mxu0 0
    %754 = vmatpush2.bf16.msra.mxu0 0
    %755 = vmatprep.subr.bf16.mxu0 0
    %756 = vmatpush2.bf16.msra.mxu0 0
    %757 = vmatprep.subr.bf16.mxu0 0
    %758 = vmatpush2.bf16.msra.mxu0 0
    %759 = vmatprep.subr.bf16.mxu0 0
    %760 = vmatpush2.bf16.msra.mxu0 0
    %761 = vmatprep.subr.bf16.mxu0 0
    %762 = vmatpush2.bf16.msra.mxu0 0
    %763 = vmatprep.subr.bf16.mxu0 0
    %764 = vmatpush2.bf16.msra.mxu0 0
    %765 = vmatprep.mubr.bf16.mxu0 0
    %766 = vmatmul.mubr.bf16.gmra.mxu0 %v661
    %v767 = vpop.f32.mrf.mxu0
    %v768 = vadd.f32 %v683, %v767
    %v769 = vpop.f32.mrf.mxu0
    %v770 = vpop.f32.mrf.mxu0
    %v771 = vpop.f32.mrf.mxu0
    %772 = vdwg.mxu0
    %v773 = vmax.f32 %v768, 0.0
    %v774 = vld [vmem:[#allocation8] sm:$0x1]
    %v776 = vlaneseq
    %v777 = vshrl.u32 %v776, 7
    %v778 = vsub.s32 0, %v777
    %v779 = vrot.slane %v774, %v778
    %v781 = vmul.f32 %v773, %v779
    %782 = vadd.xlane.f32.xlu0 %v781
    %v783 = vpop.xlane.xlu0 %782
    %v784 = vld [vmem:[#allocation2] sm:$0x1]
    %v786 = vlaneseq
    %v787 = vshrl.u32 %v786, 7
    %v788 = vsub.s32 0, %v787
    %v789 = vrot.slane %v784, %v788
    %v791 = vadd.f32 %v783, %v789
    %vm792 = vcmask 7168
    %793 = vst.msk [vmem:[%s9] sm:$0xff] %vm792, %v791
    // Predicated region
    $region54: #{net_linear_sum_forward.1} parent=1 // pred_check
      _
    $region55: #{net_linear_sum_forward.1} parent=1 // pred_check_branch
      %795 = sbr.rel (0) target = $region57
    $region56: #{net_linear_sum_forward.1} parent=1 // pred_region
      _
    $region57: #{net_linear_sum_forward.1} parent=1 // pred_fallthru
      _
    // Predicated region
    $region58: #{net_linear_sum_forward.1} parent=1 // pred_check
      _
    $region59: #{net_linear_sum_forward.1} parent=1 // pred_check_branch
      %797 = sbr.rel (0) target = $region61
    $region60: #{net_linear_sum_forward.1} parent=1 // pred_region
      _
    $region61: #{net_linear_sum_forward.1} parent=1 // pred_fallthru
      _
    %798 = vsyncpa [#allocation4], 1
    %799 = vsyncpa [#allocation6], 1
    %800 = vsyncpa [#allocation9], 1

</llo_original>
